<compile_context>
chip_gen: v7x
topology: tpu7x:2x2x1
jax: 0.10.0
libtpu: 0.0.40
codegen_flags: <defaults>
</compile_context>

<pallas_src>
import functools

import jax
import jax.numpy as jnp
from jax.experimental import pallas as pl
from jax.experimental.pallas import tpu as pltpu


def _round_up(a: int, b: int) -> int:
    return ((a + b - 1) // b) * b


def _linear_kernel(x_ref, w_ref, b_ref, o_ref):
    """One (tile_m, tile_n) output block: y = x @ W + b, f32 accumulation."""
    acc = jnp.dot(x_ref[...], w_ref[...], preferred_element_type=jnp.float32)
    o_ref[...] = (acc + b_ref[...]).astype(o_ref.dtype)


@functools.partial(jax.jit, static_argnames=("tile_m", "compute_dtype"))
def sequence_wise_linear(x, weight, bias, *, tile_m=512,
                         compute_dtype=jnp.bfloat16):
    """SequenceWise(nn.Linear) forward.

    x:      (T, N, H_in)   time-major, like the PyTorch module
    weight: (H_out, H_in)  PyTorch nn.Linear layout
    bias:   (H_out,)
    returns (T, N, H_out) in x.dtype (matmul in `compute_dtype`, f32 accum).
    """
    t, n, h_in = x.shape
    h_out = weight.shape[0]
    m = t * n

    # ---- lane-dense padding of the hidden dims (multiples of 128) ----------
    h_in_p = _round_up(h_in, 128)
    h_out_p = _round_up(h_out, 128)

    # ---- row-tile selection -------------------------------------------------
    sublane = 16 if jnp.dtype(compute_dtype).itemsize == 2 else 8
    tile_m = _round_up(max(sublane, min(tile_m, _round_up(m, sublane))), sublane)
    # Expose >=2 grid steps along M when possible so v7x's two TensorCores
    # both get work (neutral on v5e/v6e).
    if _round_up(m, tile_m) // tile_m < 2 and m > sublane:
        tile_m = _round_up(-(-m // 2), sublane)
    m_p = _round_up(m, tile_m)

    # ---- output-column tile (lane-dense, divides padded H_out) -------------
    if h_out_p <= 512:
        tile_n = h_out_p
    else:
        tile_n = next(c for c in (512, 256, 128) if h_out_p % c == 0)

    # ---- prepare operands (flatten, cast, zero-pad) -------------------------
    x2d = x.reshape(m, h_in).astype(compute_dtype)          # view(t*n, -1)
    if (m_p, h_in_p) != (m, h_in):
        x2d = jnp.pad(x2d, ((0, m_p - m), (0, h_in_p - h_in)))

    w_t = weight.astype(compute_dtype).T                     # (H_in, H_out)
    if (h_in_p, h_out_p) != (h_in, h_out):
        w_t = jnp.pad(w_t, ((0, h_in_p - h_in), (0, h_out_p - h_out)))

    b2d = jnp.pad(bias.astype(jnp.float32), (0, h_out_p - h_out))
    b2d = b2d.reshape(1, h_out_p)

    grid = (m_p // tile_m, h_out_p // tile_n)

    # ---- VMEM budget (double-buffered blocks), capped for v7x's 64 MiB -----
    cdt_bytes = jnp.dtype(compute_dtype).itemsize
    out_bytes = jnp.dtype(x.dtype).itemsize
    vmem_needed = (2 * tile_m * h_in_p * cdt_bytes        # x block
                   + 2 * h_in_p * tile_n * cdt_bytes      # weight block
                   + 2 * 1 * tile_n * 4                   # bias block
                   + 2 * tile_m * tile_n * out_bytes)     # out block
    vmem_limit = int(min(max(2 * vmem_needed, 8 * 2 ** 20), 48 * 2 ** 20))

    cost = pl.CostEstimate(
        flops=2 * m_p * h_in_p * h_out_p,
        transcendentals=0,
        bytes_accessed=(m_p * h_in_p * cdt_bytes
                        + h_in_p * h_out_p * cdt_bytes
                        + m_p * h_out_p * out_bytes),
    )

    out2d = pl.pallas_call(
        _linear_kernel,
        out_shape=jax.ShapeDtypeStruct((m_p, h_out_p), x.dtype),
        grid_spec=pltpu.PrefetchScalarGridSpec(
            num_scalar_prefetch=0,
            grid=grid,
            in_specs=[
                pl.BlockSpec((tile_m, h_in_p), lambda i, j: (i, 0)),   # x rows
                pl.BlockSpec((h_in_p, tile_n), lambda i, j: (0, j)),   # W cols
                pl.BlockSpec((1, tile_n), lambda i, j: (0, j)),        # bias
            ],
            out_specs=pl.BlockSpec((tile_m, tile_n), lambda i, j: (i, j)),
        ),
        compiler_params=pltpu.CompilerParams(
            dimension_semantics=("parallel", "parallel"),
            vmem_limit_bytes=vmem_limit,
        ),
        cost_estimate=cost,
    )(x2d, w_t, b2d)

    # Strip padding and restore (T, N, H_out) -- view(t, n, -1).
    return out2d[:m, :h_out].reshape(t, n, h_out)


if __name__ == "__main__":
    # Small shapes consistent with the module: T=8 timesteps, N=2 batch, H=32.
    T, N, H_IN, H_OUT = 8, 2, 32, 32

    key = jax.random.PRNGKey(0)
    kx, kw, kb = jax.random.split(key, 3)

    x = jax.random.normal(kx, (T, N, H_IN), dtype=jnp.float32)
    # Deterministic nn.Linear-style parameters (PyTorch layout: (out, in)).
    weight = jax.random.normal(kw, (H_OUT, H_IN), dtype=jnp.float32) * 0.1
    bias = jax.random.normal(kb, (H_OUT,), dtype=jnp.float32) * 0.1

    # Pure-JAX reference of the SequenceWise(Linear) forward.
    ref = (x.reshape(T * N, H_IN) @ weight.T + bias).reshape(T, N, H_OUT)

    # Default fast path: bf16 operands, f32 accumulation.
    out_bf16 = jax.block_until_ready(sequence_wise_linear(x, weight, bias))
    assert out_bf16.shape == (T, N, H_OUT), out_bf16.shape
    assert jnp.allclose(out_bf16, ref, atol=2e-2, rtol=2e-2), "bf16 mismatch"

    # Full-precision path: tight check of the kernel plumbing / padding.
    out_f32 = jax.block_until_ready(
        sequence_wise_linear(x, weight, bias, compute_dtype=jnp.float32))
    assert out_f32.shape == (T, N, H_OUT), out_f32.shape
    assert jnp.allclose(out_f32, ref, atol=1e-5, rtol=1e-5), "f32 mismatch"

    print("KERNEL_OK")
</pallas_src>

<mosaic_0001>
module attributes {stable_mosaic.version = 11 : i64} {
  func.func @_linear_kernel(%arg0: i32, %arg1: i32, %arg2: memref<16x128xbf16, #tpu.memory_space<vmem>>, %arg3: memref<128x128xbf16, #tpu.memory_space<vmem>>, %arg4: memref<1x128xf32, #tpu.memory_space<vmem>>, %arg5: memref<16x128xf32, #tpu.memory_space<vmem>>) attributes {dimension_semantics = [#tpu.dimension_semantics<parallel>, #tpu.dimension_semantics<parallel>], iteration_bounds = array<i64: 1, 1>, scalar_prefetch = 0 : i64, scratch_operands = 0 : i64, tpu.core_type = #tpu.core_type<tc>, window_params = [{transform_indices = @transform_0, window_bounds = array<i64: 16, 128>}, {transform_indices = @transform_1, window_bounds = array<i64: 128, 128>}, {transform_indices = @transform_2, window_bounds = array<i64: 1, 128>}, {transform_indices = @transform_3, window_bounds = array<i64: 16, 128>}]} {
    %c0 = arith.constant 0 : index
    %c0_0 = arith.constant 0 : index
    %0 = vector.load %arg2[%c0, %c0_0] : memref<16x128xbf16, #tpu.memory_space<vmem>>, vector<16x128xbf16>
    %c0_1 = arith.constant 0 : index
    %c0_2 = arith.constant 0 : index
    %1 = vector.load %arg3[%c0_1, %c0_2] : memref<128x128xbf16, #tpu.memory_space<vmem>>, vector<128x128xbf16>
    %cst = arith.constant dense<0.000000e+00> : vector<16x128xf32>
    %2 = tpu.matmul %0, %1, %cst {dimension_numbers = #tpu.dot_dimension_numbers<[1], [0], [0], [1], [0, 0, 1, 1], [], []>} : vector<16x128xbf16>, vector<128x128xbf16>, vector<16x128xf32> -> vector<16x128xf32>
    %c0_3 = arith.constant 0 : index
    %c0_4 = arith.constant 0 : index
    %3 = vector.load %arg4[%c0_3, %c0_4] : memref<1x128xf32, #tpu.memory_space<vmem>>, vector<1x128xf32>
    %4 = vector.broadcast %3 : vector<1x128xf32> to vector<16x128xf32>
    %5 = arith.addf %2, %4 : vector<16x128xf32>
    %c0_5 = arith.constant 0 : index
    %c0_6 = arith.constant 0 : index
    %6 = vector.load %arg5[%c0_5, %c0_6] : memref<16x128xf32, #tpu.memory_space<vmem>>, vector<16x128xf32>
    tpu.vector_store %arg5[%c0_5, %c0_6], %5 {strides = array<i32>} : memref<16x128xf32, #tpu.memory_space<vmem>>, vector<16x128xf32>,
    return
  }
  func.func @transform_0(%arg0: i32, %arg1: i32) -> (i32, i32) {
    %c0_i32 = arith.constant 0 : i32
    %c0_i32_0 = arith.constant 0 : i32
    return %arg0, %c0_i32 : i32, i32
  }
  func.func @transform_1(%arg0: i32, %arg1: i32) -> (i32, i32) {
    %c0_i32 = arith.constant 0 : i32
    %c0_i32_0 = arith.constant 0 : i32
    return %c0_i32, %arg1 : i32, i32
  }
  func.func @transform_2(%arg0: i32, %arg1: i32) -> (i32, i32) {
    %c0_i32 = arith.constant 0 : i32
    %c0_i32_0 = arith.constant 0 : i32
    return %c0_i32, %arg1 : i32, i32
  }
  func.func @transform_3(%arg0: i32, %arg1: i32) -> (i32, i32) {
    %c0_i32 = arith.constant 0 : i32
    return %arg0, %arg1 : i32, i32
  }
}

</mosaic_0001>

<llo_original>
// kernel: sequence_wise_linear.1
$region0: #{sequence_wise_linear.1}
  #allocation0 [shape = 'u32[]', space=smem, size = 0x4, offset = 0x4, fixed_abs, tag = 'smem constant byte address 0x4 - core index']
  #allocation1 [shape = 'u32[144,128]{1,0:T(1,128)}', space=vmem, size = 0x12000, scoped, tag = 'internal scratch']
  %s0 = inlined_call_operand.vmem [shape: bf16[16,128], index: 0, kind: input, shape index: {}]
  %s1 = inlined_call_operand.vmem [shape: bf16[128,128], index: 1, kind: input, shape index: {}]
  %s2 = inlined_call_operand.vmem [shape: f32[1,128], index: 2, kind: input, shape index: {}]
  %s3 = inlined_call_operand.hbm [shape: f32[16,128], index: 3, kind: output, shape index: {}]
  %s4 = sld [smem:[#allocation0]]
  $region22: #{sequence_wise_linear.1} parent=0
    _
  %s6 = ssub.s32 1, %s4
  %s7 = scalar_select 0, %s6, %s4
  $region1: #{sequence_wise_linear.1} parent=0
    #allocation2 [shape = 'u8[8192]{0}', space=vmem, size = 0x2000, scoped, tag = 'output window, operand 0, single buffered']
    #allocation3 [shape = 's32[1]{0}', space=sflag, size = 0x4, scoped, tag = 'scoped memory for sequence_wise_linear.1']
    %8 = vsyncpa [#allocation3], 0
    // Predicated region
    $region2: #{sequence_wise_linear.1} parent=1 // pred_check
      _
    $region3: #{sequence_wise_linear.1} parent=1 // pred_check_branch
      %10 = sbr.rel (0) target = $region5
    $region4: #{sequence_wise_linear.1} parent=1 // pred_region
      _
    $region5: #{sequence_wise_linear.1} parent=1 // pred_fallthru
      _
    // Predicated region
    $region6: #{sequence_wise_linear.1} parent=1 // pred_check
      _
    $region7: #{sequence_wise_linear.1} parent=1 // pred_check_branch
      %12 = sbr.rel (0) target = $region9
    $region8: #{sequence_wise_linear.1} parent=1 // pred_region
      _
    $region9: #{sequence_wise_linear.1} parent=1 // pred_fallthru
      _
    // Predicated region
    $region10: #{sequence_wise_linear.1} parent=1 // pred_check
      _
    $region11: #{sequence_wise_linear.1} parent=1 // pred_check_branch
      %14 = sbr.rel (0) target = $region13
    $region12: #{sequence_wise_linear.1} parent=1 // pred_region
      _
    $region13: #{sequence_wise_linear.1} parent=1 // pred_fallthru
      _
    %v16 = vld [vmem:[%s0] sm:$0xf]
    %v17 = vld [vmem:[%s0 + $0x4] sm:$0xf]
    %v18 = vld [vmem:[%s1] sm:$0xf]
    %v19 = vld [vmem:[%s1 + $0x4] sm:$0xf]
    %v20 = vld [vmem:[%s1 + $0x8] sm:$0xf]
    %v21 = vld [vmem:[%s1 + $0xc] sm:$0xf]
    %v22 = vld [vmem:[%s1 + $0x10] sm:$0xf]
    %v23 = vld [vmem:[%s1 + $0x14] sm:$0xf]
    %v24 = vld [vmem:[%s1 + $0x18] sm:$0xf]
    %v25 = vld [vmem:[%s1 + $0x1c] sm:$0xf]
    %v26 = vld [vmem:[%s1 + $0x20] sm:$0xf]
    %v27 = vld [vmem:[%s1 + $0x24] sm:$0xf]
    %v28 = vld [vmem:[%s1 + $0x28] sm:$0xf]
    %v29 = vld [vmem:[%s1 + $0x2c] sm:$0xf]
    %v30 = vld [vmem:[%s1 + $0x30] sm:$0xf]
    %v31 = vld [vmem:[%s1 + $0x34] sm:$0xf]
    %v32 = vld [vmem:[%s1 + $0x38] sm:$0xf]
    %v33 = vld [vmem:[%s1 + $0x3c] sm:$0xf]
    %v34 = vld [vmem:[%s2] sm:$0x1]
    %v36 = vlaneseq
    %v37 = vshrl.u32 %v36, 7
    %v38 = vsub.s32 0, %v37
    %v39 = vrot.slane %v34, %v38
    %v43 = vunpack.c.l.b16 %v16
    %v44 = vunpack.c.l.b16 %v17
    %v45 = vpack.c.b16 %v44, %v43
    %v63 = vunpack.c.l.b16 %v18
    %v64 = vunpack.c.l.b16 %v19
    %v65 = vunpack.c.l.b16 %v20
    %v66 = vunpack.c.l.b16 %v21
    %v67 = vunpack.c.l.b16 %v22
    %v68 = vunpack.c.l.b16 %v23
    %v69 = vunpack.c.l.b16 %v24
    %v70 = vunpack.c.l.b16 %v25
    %v71 = vunpack.c.l.b16 %v26
    %v72 = vunpack.c.l.b16 %v27
    %v73 = vunpack.c.l.b16 %v28
    %v74 = vunpack.c.l.b16 %v29
    %v75 = vunpack.c.l.b16 %v30
    %v76 = vunpack.c.l.b16 %v31
    %v77 = vunpack.c.l.b16 %v32
    %v78 = vunpack.c.l.b16 %v33
    %v79 = vpack.c.b16 %v64, %v63
    %v80 = vpack.c.b16 %v66, %v65
    %v81 = vpack.c.b16 %v68, %v67
    %v82 = vpack.c.b16 %v70, %v69
    %v83 = vpack.c.b16 %v72, %v71
    %v84 = vpack.c.b16 %v74, %v73
    %v85 = vpack.c.b16 %v76, %v75
    %v86 = vpack.c.b16 %v78, %v77
    %95 = vmatprep.subr.bf16.mxu0 0
    %96 = vmatpush1.bf16.msra.mxu0 %v79
    %97 = vmatprep.subr.bf16.mxu0 0
    %98 = vmatpush1.bf16.msra.mxu0 %v80
    %99 = vmatprep.subr.bf16.mxu0 0
    %100 = vmatpush1.bf16.msra.mxu0 %v81
    %101 = vmatprep.subr.bf16.mxu0 0
    %102 = vmatpush1.bf16.msra.mxu0 %v82
    %103 = vmatprep.subr.bf16.mxu0 0
    %104 = vmatpush1.bf16.msra.mxu0 %v83
    %105 = vmatprep.subr.bf16.mxu0 0
    %106 = vmatpush1.bf16.msra.mxu0 %v84
    %107 = vmatprep.subr.bf16.mxu0 0
    %108 = vmatpush1.bf16.msra.mxu0 %v85
    %109 = vmatprep.subr.bf16.mxu0 0
    %110 = vmatpush1.bf16.msra.mxu0 %v86
    %111 = vmatprep.subr.bf16.mxu0 0
    %112 = vmatpush1.bf16.msra.mxu0 0
    %113 = vmatprep.subr.bf16.mxu0 0
    %114 = vmatpush1.bf16.msra.mxu0 0
    %115 = vmatprep.subr.bf16.mxu0 0
    %116 = vmatpush1.bf16.msra.mxu0 0
    %117 = vmatprep.subr.bf16.mxu0 0
    %118 = vmatpush1.bf16.msra.mxu0 0
    %119 = vmatprep.subr.bf16.mxu0 0
    %120 = vmatpush1.bf16.msra.mxu0 0
    %121 = vmatprep.subr.bf16.mxu0 0
    %122 = vmatpush1.bf16.msra.mxu0 0
    %123 = vmatprep.subr.bf16.mxu0 0
    %124 = vmatpush1.bf16.msra.mxu0 0
    %125 = vmatprep.subr.bf16.mxu0 0
    %126 = vmatpush1.bf16.msra.mxu0 0
    %127 = vmatprep.mubr.bf16.mxu0 0
    %128 = vmatmul.mubr.bf16.gmra.mrb[0].mxu0 %v45
    %v129 = vpop.f32.mrb[0].mxu0
    %v130 = vadd.f32 %v39, %v129
    %v131 = vpop.f32.mrb[0].mxu0
    %v132 = vpop.f32.mrb[0].mxu0
    %v133 = vadd.f32 %v39, %v132
    %v134 = vpop.f32.mrb[0].mxu0
    %135 = vdwg.mxu0
    %136 = vst [vmem:[#allocation2] sm:$0xff] %v130
    %137 = vst [vmem:[#allocation2 + $0x8] sm:$0xff] %v133
    // Predicated region
    $region14: #{sequence_wise_linear.1} parent=1 // pred_check
      _
    $region15: #{sequence_wise_linear.1} parent=1 // pred_check_branch
      %139 = sbr.rel (0) target = $region17
    $region16: #{sequence_wise_linear.1} parent=1 // pred_region
      %s141 = ssub.s32 256, 256
      %142 = vsyncadd [#allocation3], %s141
      %s143 = sshll.u32 [#allocation2], 4
      %s144 = int_to_ptr.vmem [resolvable:$true] %s143
      %149 = dma.vmem_to_hbm [thread:$0]  %s144, 256, %s3, [#allocation3], 128, 128, 8
    $region17: #{sequence_wise_linear.1} parent=1 // pred_fallthru
      _
    // Predicated region
    $region18: #{sequence_wise_linear.1} parent=1 // pred_check
      _
    $region19: #{sequence_wise_linear.1} parent=1 // pred_check_branch
      %151 = sbr.rel (0) target = $region21
    $region20: #{sequence_wise_linear.1} parent=1 // pred_region
      %152 = dma.done [#allocation3], 256
    $region21: #{sequence_wise_linear.1} parent=1 // pred_fallthru
      _
    %153 = vsyncpa [#allocation3], 1

</llo_original>
